<compile_context>
chip_gen: v7x
topology: tpu7x:2x2x1
jax: 0.10.0
libtpu: 0.0.40
codegen_flags: <defaults>
</compile_context>

<pallas_src>
import functools

import jax
import jax.numpy as jnp
from jax.experimental import pallas as pl
from jax.experimental.pallas import tpu as pltpu

LANE = 128        # TPU lane width; output feature dim padded to a multiple of this
SUBLANE = 8       # sublane granule; batch tile rounded up to a multiple of this
MAX_TILE_B = 512  # largest batch tile (biggest-that-fits-VMEM; amortizes step cost)


def whist_net_kernel(x_ref,
                     w1_ref, b1_ref,
                     w2_ref, b2_ref,
                     w3_ref, b3_ref,
                     w4_ref, b4_ref,
                     o_ref):
    # fc1 + relu
    h = jnp.dot(x_ref[...], w1_ref[...], preferred_element_type=jnp.float32)
    h = jnp.maximum(h + b1_ref[...], 0.0)
    # fc2 + relu
    h = jnp.dot(h, w2_ref[...], preferred_element_type=jnp.float32)
    h = jnp.maximum(h + b2_ref[...], 0.0)
    # fc3 + relu
    h = jnp.dot(h, w3_ref[...], preferred_element_type=jnp.float32)
    h = jnp.maximum(h + b3_ref[...], 0.0)
    # fc4 (no activation); output tile is lane-dense (tile_b, 128*k)
    h = jnp.dot(h, w4_ref[...], preferred_element_type=jnp.float32)
    o_ref[...] = (h + b4_ref[...]).astype(o_ref.dtype)


def pad_output_layer(params):
    """Zero-pad the last layer to a lane-dense (multiple of 128) width."""
    out_size = params["w4"].shape[1]
    out_pad = pl.cdiv(out_size, LANE) * LANE
    if out_pad == out_size:
        return params, out_size
    p = dict(params)
    p["w4"] = jnp.pad(params["w4"], ((0, 0), (0, out_pad - out_size)))
    p["b4"] = jnp.pad(params["b4"], ((0, 0), (0, out_pad - out_size)))
    return p, out_size


def _round_up(n, m):
    return pl.cdiv(n, m) * m


def _choose_tile_b(batch):
    """Single tile for small batches, MAX_TILE_B for large batches."""
    if batch <= MAX_TILE_B:
        return _round_up(batch, SUBLANE)
    return MAX_TILE_B


@functools.partial(jax.jit, static_argnames=("out_size",))
def whist_net_forward(x, params, out_size):
    """x: (B, input_size) f32.  params: pre-transposed (in, out) weights with the
    last layer lane-padded (see pad_output_layer).  Returns (B, out_size) f32."""
    B, in_size = x.shape
    hidden = params["w1"].shape[1]
    out_pad = params["w4"].shape[1]

    tile_b = _choose_tile_b(B)
    b_pad = _round_up(B, tile_b)
    if b_pad != B:
        x = jnp.pad(x, ((0, b_pad - B), (0, 0)))
    grid = (b_pad // tile_b,)

    def batch_map(i):
        return (i, 0)

    def const_map(i):
        return (0, 0)

    in_specs = [
        pl.BlockSpec((tile_b, in_size), batch_map),     # x tile (streamed)
        pl.BlockSpec(params["w1"].shape, const_map),    # weights/biases: VMEM-resident
        pl.BlockSpec(params["b1"].shape, const_map),
        pl.BlockSpec(params["w2"].shape, const_map),
        pl.BlockSpec(params["b2"].shape, const_map),
        pl.BlockSpec(params["w3"].shape, const_map),
        pl.BlockSpec(params["b3"].shape, const_map),
        pl.BlockSpec(params["w4"].shape, const_map),
        pl.BlockSpec(params["b4"].shape, const_map),
    ]
    out_specs = pl.BlockSpec((tile_b, out_pad), batch_map)

    flops = 2 * b_pad * (in_size * hidden + 2 * hidden * hidden + hidden * out_pad)
    bytes_accessed = 4 * (
        b_pad * in_size + b_pad * out_pad
        + in_size * hidden + 2 * hidden * hidden + hidden * out_pad
        + 3 * hidden + out_pad)

    out = pl.pallas_call(
        whist_net_kernel,
        out_shape=jax.ShapeDtypeStruct((b_pad, out_pad), jnp.float32),
        grid=grid,
        in_specs=in_specs,
        out_specs=out_specs,
        compiler_params=pltpu.CompilerParams(
            dimension_semantics=("parallel",)),
        cost_estimate=pl.CostEstimate(
            flops=flops, transcendentals=0, bytes_accessed=bytes_accessed),
    )(x,
      params["w1"], params["b1"],
      params["w2"], params["b2"],
      params["w3"], params["b3"],
      params["w4"], params["b4"])

    return out[:B, :out_size]


def init_params(key, input_size, hidden_size, output_size):
    """Deterministic PyTorch-style (Kaiming-uniform-ish) init.
    Weights stored pre-transposed as (in, out); biases as (1, out)."""
    dims = [(input_size, hidden_size),
            (hidden_size, hidden_size),
            (hidden_size, hidden_size),
            (hidden_size, output_size)]
    params = {}
    for i, (fan_in, fan_out) in enumerate(dims, start=1):
        key, kw, kb = jax.random.split(key, 3)
        bound = 1.0 / jnp.sqrt(jnp.float32(fan_in))
        params[f"w{i}"] = jax.random.uniform(
            kw, (fan_in, fan_out), jnp.float32, -bound, bound)
        params[f"b{i}"] = jax.random.uniform(
            kb, (1, fan_out), jnp.float32, -bound, bound)
    return params


def reference_forward(x, params):
    h = jnp.maximum(x @ params["w1"] + params["b1"], 0.0)
    h = jnp.maximum(h @ params["w2"] + params["b2"], 0.0)
    h = jnp.maximum(h @ params["w3"] + params["b3"], 0.0)
    return h @ params["w4"] + params["b4"]


if __name__ == "__main__":
    input_size, hidden_size, output_size = 64, 256, 16
    batch = 8

    key = jax.random.PRNGKey(0)
    key, kx = jax.random.split(key)
    x = jax.random.normal(kx, (batch, input_size), jnp.float32)
    params = init_params(key, input_size, hidden_size, output_size)

    # Pad the last layer once (outside the kernel) so kernel stores are lane-dense.
    kernel_params, out_size = pad_output_layer(params)

    out = whist_net_forward(x, kernel_params, out_size)
    out = jax.block_until_ready(out)

    ref = reference_forward(x, params)
    assert out.shape == (batch, output_size), out.shape
    assert jnp.allclose(out, ref, atol=1e-4, rtol=1e-4)

    # Also exercise a multi-tile batch (several grid steps, tile_b = 512).
    key, kx2 = jax.random.split(key)
    x_big = jax.random.normal(kx2, (1030, input_size), jnp.float32)
    out_big = jax.block_until_ready(whist_net_forward(x_big, kernel_params, out_size))
    ref_big = reference_forward(x_big, params)
    assert out_big.shape == (1030, output_size), out_big.shape
    assert jnp.allclose(out_big, ref_big, atol=1e-4, rtol=1e-4)

    print("KERNEL_OK")
</pallas_src>

<mosaic_0001>
module attributes {stable_mosaic.version = 11 : i64} {
  func.func @whist_net_kernel(%arg0: i32, %arg1: memref<8x64xf32, #tpu.memory_space<vmem>>, %arg2: memref<64x256xf32, #tpu.memory_space<vmem>>, %arg3: memref<1x256xf32, #tpu.memory_space<vmem>>, %arg4: memref<256x256xf32, #tpu.memory_space<vmem>>, %arg5: memref<1x256xf32, #tpu.memory_space<vmem>>, %arg6: memref<256x256xf32, #tpu.memory_space<vmem>>, %arg7: memref<1x256xf32, #tpu.memory_space<vmem>>, %arg8: memref<256x128xf32, #tpu.memory_space<vmem>>, %arg9: memref<1x128xf32, #tpu.memory_space<vmem>>, %arg10: memref<8x128xf32, #tpu.memory_space<vmem>>) attributes {dimension_semantics = [#tpu.dimension_semantics<parallel>], iteration_bounds = array<i64: 1>, scalar_prefetch = 0 : i64, scratch_operands = 0 : i64, tpu.core_type = #tpu.core_type<tc>, window_params = [{transform_indices = @transform_0, window_bounds = array<i64: 8, 64>}, {pipeline_mode = #tpu.pipeline_mode<synchronous>, transform_indices = @transform_1, window_bounds = array<i64: 64, 256>}, {pipeline_mode = #tpu.pipeline_mode<synchronous>, transform_indices = @transform_2, window_bounds = array<i64: 1, 256>}, {pipeline_mode = #tpu.pipeline_mode<synchronous>, transform_indices = @transform_3, window_bounds = array<i64: 256, 256>}, {pipeline_mode = #tpu.pipeline_mode<synchronous>, transform_indices = @transform_4, window_bounds = array<i64: 1, 256>}, {pipeline_mode = #tpu.pipeline_mode<synchronous>, transform_indices = @transform_5, window_bounds = array<i64: 256, 256>}, {pipeline_mode = #tpu.pipeline_mode<synchronous>, transform_indices = @transform_6, window_bounds = array<i64: 1, 256>}, {pipeline_mode = #tpu.pipeline_mode<synchronous>, transform_indices = @transform_7, window_bounds = array<i64: 256, 128>}, {pipeline_mode = #tpu.pipeline_mode<synchronous>, transform_indices = @transform_8, window_bounds = array<i64: 1, 128>}, {transform_indices = @transform_9, window_bounds = array<i64: 8, 128>}]} {
    %c0 = arith.constant 0 : index
    %c0_0 = arith.constant 0 : index
    %0 = vector.load %arg1[%c0, %c0_0] : memref<8x64xf32, #tpu.memory_space<vmem>>, vector<8x64xf32>
    %c0_1 = arith.constant 0 : index
    %c0_2 = arith.constant 0 : index
    %1 = vector.load %arg2[%c0_1, %c0_2] : memref<64x256xf32, #tpu.memory_space<vmem>>, vector<64x256xf32>
    %cst = arith.constant dense<0.000000e+00> : vector<8x256xf32>
    %2 = tpu.matmul %0, %1, %cst {dimension_numbers = #tpu.dot_dimension_numbers<[1], [0], [0], [1], [0, 0, 1, 1], [], []>} : vector<8x64xf32>, vector<64x256xf32>, vector<8x256xf32> -> vector<8x256xf32>
    %c0_3 = arith.constant 0 : index
    %c0_4 = arith.constant 0 : index
    %3 = vector.load %arg3[%c0_3, %c0_4] : memref<1x256xf32, #tpu.memory_space<vmem>>, vector<1x256xf32>
    %4 = vector.broadcast %3 : vector<1x256xf32> to vector<8x256xf32>
    %5 = arith.addf %2, %4 : vector<8x256xf32>
    %cst_5 = arith.constant 0.000000e+00 : f32
    %6 = vector.broadcast %cst_5 : f32 to vector<8x256xf32>
    %7 = arith.maximumf %5, %6 : vector<8x256xf32>
    %c0_6 = arith.constant 0 : index
    %c0_7 = arith.constant 0 : index
    %8 = vector.load %arg4[%c0_6, %c0_7] : memref<256x256xf32, #tpu.memory_space<vmem>>, vector<256x256xf32>
    %cst_8 = arith.constant dense<0.000000e+00> : vector<8x256xf32>
    %9 = tpu.matmul %7, %8, %cst_8 {dimension_numbers = #tpu.dot_dimension_numbers<[1], [0], [0], [1], [0, 0, 1, 1], [], []>} : vector<8x256xf32>, vector<256x256xf32>, vector<8x256xf32> -> vector<8x256xf32>
    %c0_9 = arith.constant 0 : index
    %c0_10 = arith.constant 0 : index
    %10 = vector.load %arg5[%c0_9, %c0_10] : memref<1x256xf32, #tpu.memory_space<vmem>>, vector<1x256xf32>
    %11 = vector.broadcast %10 : vector<1x256xf32> to vector<8x256xf32>
    %12 = arith.addf %9, %11 : vector<8x256xf32>
    %cst_11 = arith.constant 0.000000e+00 : f32
    %13 = vector.broadcast %cst_11 : f32 to vector<8x256xf32>
    %14 = arith.maximumf %12, %13 : vector<8x256xf32>
    %c0_12 = arith.constant 0 : index
    %c0_13 = arith.constant 0 : index
    %15 = vector.load %arg6[%c0_12, %c0_13] : memref<256x256xf32, #tpu.memory_space<vmem>>, vector<256x256xf32>
    %cst_14 = arith.constant dense<0.000000e+00> : vector<8x256xf32>
    %16 = tpu.matmul %14, %15, %cst_14 {dimension_numbers = #tpu.dot_dimension_numbers<[1], [0], [0], [1], [0, 0, 1, 1], [], []>} : vector<8x256xf32>, vector<256x256xf32>, vector<8x256xf32> -> vector<8x256xf32>
    %c0_15 = arith.constant 0 : index
    %c0_16 = arith.constant 0 : index
    %17 = vector.load %arg7[%c0_15, %c0_16] : memref<1x256xf32, #tpu.memory_space<vmem>>, vector<1x256xf32>
    %18 = vector.broadcast %17 : vector<1x256xf32> to vector<8x256xf32>
    %19 = arith.addf %16, %18 : vector<8x256xf32>
    %cst_17 = arith.constant 0.000000e+00 : f32
    %20 = vector.broadcast %cst_17 : f32 to vector<8x256xf32>
    %21 = arith.maximumf %19, %20 : vector<8x256xf32>
    %c0_18 = arith.constant 0 : index
    %c0_19 = arith.constant 0 : index
    %22 = vector.load %arg8[%c0_18, %c0_19] : memref<256x128xf32, #tpu.memory_space<vmem>>, vector<256x128xf32>
    %cst_20 = arith.constant dense<0.000000e+00> : vector<8x128xf32>
    %23 = tpu.matmul %21, %22, %cst_20 {dimension_numbers = #tpu.dot_dimension_numbers<[1], [0], [0], [1], [0, 0, 1, 1], [], []>} : vector<8x256xf32>, vector<256x128xf32>, vector<8x128xf32> -> vector<8x128xf32>
    %c0_21 = arith.constant 0 : index
    %c0_22 = arith.constant 0 : index
    %24 = vector.load %arg9[%c0_21, %c0_22] : memref<1x128xf32, #tpu.memory_space<vmem>>, vector<1x128xf32>
    %25 = vector.broadcast %24 : vector<1x128xf32> to vector<8x128xf32>
    %26 = arith.addf %23, %25 : vector<8x128xf32>
    %c0_23 = arith.constant 0 : index
    %c0_24 = arith.constant 0 : index
    %27 = vector.load %arg10[%c0_23, %c0_24] : memref<8x128xf32, #tpu.memory_space<vmem>>, vector<8x128xf32>
    tpu.vector_store %arg10[%c0_23, %c0_24], %26 {strides = array<i32>} : memref<8x128xf32, #tpu.memory_space<vmem>>, vector<8x128xf32>,
    return
  }
  func.func @transform_0(%arg0: i32) -> (i32, i32) {
    %c0_i32 = arith.constant 0 : i32
    %c0_i32_0 = arith.constant 0 : i32
    return %arg0, %c0_i32 : i32, i32
  }
  func.func @transform_1(%arg0: i32) -> (i32, i32) {
    %c0_i32 = arith.constant 0 : i32
    %c0_i32_0 = arith.constant 0 : i32
    %c0_i32_1 = arith.constant 0 : i32
    return %c0_i32, %c0_i32_0 : i32, i32
  }
  func.func @transform_2(%arg0: i32) -> (i32, i32) {
    %c0_i32 = arith.constant 0 : i32
    %c0_i32_0 = arith.constant 0 : i32
    %c0_i32_1 = arith.constant 0 : i32
    return %c0_i32, %c0_i32_0 : i32, i32
  }
  func.func @transform_3(%arg0: i32) -> (i32, i32) {
    %c0_i32 = arith.constant 0 : i32
    %c0_i32_0 = arith.constant 0 : i32
    %c0_i32_1 = arith.constant 0 : i32
    return %c0_i32, %c0_i32_0 : i32, i32
  }
  func.func @transform_4(%arg0: i32) -> (i32, i32) {
    %c0_i32 = arith.constant 0 : i32
    %c0_i32_0 = arith.constant 0 : i32
    %c0_i32_1 = arith.constant 0 : i32
    return %c0_i32, %c0_i32_0 : i32, i32
  }
  func.func @transform_5(%arg0: i32) -> (i32, i32) {
    %c0_i32 = arith.constant 0 : i32
    %c0_i32_0 = arith.constant 0 : i32
    %c0_i32_1 = arith.constant 0 : i32
    return %c0_i32, %c0_i32_0 : i32, i32
  }
  func.func @transform_6(%arg0: i32) -> (i32, i32) {
    %c0_i32 = arith.constant 0 : i32
    %c0_i32_0 = arith.constant 0 : i32
    %c0_i32_1 = arith.constant 0 : i32
    return %c0_i32, %c0_i32_0 : i32, i32
  }
  func.func @transform_7(%arg0: i32) -> (i32, i32) {
    %c0_i32 = arith.constant 0 : i32
    %c0_i32_0 = arith.constant 0 : i32
    %c0_i32_1 = arith.constant 0 : i32
    return %c0_i32, %c0_i32_0 : i32, i32
  }
  func.func @transform_8(%arg0: i32) -> (i32, i32) {
    %c0_i32 = arith.constant 0 : i32
    %c0_i32_0 = arith.constant 0 : i32
    %c0_i32_1 = arith.constant 0 : i32
    return %c0_i32, %c0_i32_0 : i32, i32
  }
  func.func @transform_9(%arg0: i32) -> (i32, i32) {
    %c0_i32 = arith.constant 0 : i32
    %c0_i32_0 = arith.constant 0 : i32
    return %arg0, %c0_i32 : i32, i32
  }
}

</mosaic_0001>

<llo_original>
// kernel: whist_net_forward.1
$region0: #{whist_net_forward.1}
  #allocation0 [shape = 'u32[]', space=smem, size = 0x4, offset = 0x4, fixed_abs, tag = 'smem constant byte address 0x4 - core index']
  #allocation1 [shape = 'u32[144,128]{1,0:T(1,128)}', space=vmem, size = 0x12000, scoped, tag = 'internal scratch']
  %s0 = inlined_call_operand.hbm [shape: f32[8,64], index: 0, kind: input, shape index: {}]
  %s1 = inlined_call_operand.hbm [shape: f32[64,256], index: 1, kind: input, shape index: {}]
  %s2 = inlined_call_operand.vmem [shape: f32[1,256], index: 2, kind: input, shape index: {}]
  %s3 = inlined_call_operand.hbm [shape: f32[256,256], index: 3, kind: input, shape index: {}]
  %s4 = inlined_call_operand.vmem [shape: f32[1,256], index: 4, kind: input, shape index: {}]
  %s5 = inlined_call_operand.hbm [shape: f32[256,256], index: 5, kind: input, shape index: {}]
  %s6 = inlined_call_operand.vmem [shape: f32[1,256], index: 6, kind: input, shape index: {}]
  %s7 = inlined_call_operand.hbm [shape: f32[256,128], index: 7, kind: input, shape index: {}]
  %s8 = inlined_call_operand.vmem [shape: f32[1,128], index: 8, kind: input, shape index: {}]
  %s9 = inlined_call_operand.hbm [shape: f32[8,128], index: 9, kind: output, shape index: {}]
  %s10 = sld [smem:[#allocation0]]
  $region66: #{whist_net_forward.1} parent=0
    _
  %s12 = ssub.s32 1, %s10
  %s13 = scalar_select 0, %s12, %s10
  $region1: #{whist_net_forward.1} parent=0
    #allocation2 [shape = 'u8[4096]{0}', space=vmem, size = 0x1000, scoped, tag = 'input window, operand 0, single buffered']
    #allocation3 [shape = 's32[1]{0}', space=sflag, size = 0x4, scoped, tag = 'scoped memory for whist_net_forward.1']
    #allocation4 [shape = 's32[1]{0}', space=sflag, size = 0x4, scoped, tag = 'scoped memory for whist_net_forward.1']
    #allocation5 [shape = 'u8[65536]{0}', space=vmem, size = 0x10000, scoped, tag = 'input window, operand 1, single buffered']
    #allocation6 [shape = 's32[1]{0}', space=sflag, size = 0x4, scoped, tag = 'scoped memory for whist_net_forward.1']
    #allocation7 [shape = 'u8[262144]{0}', space=vmem, size = 0x40000, scoped, tag = 'input window, operand 3, single buffered']
    #allocation8 [shape = 'u8[262144]{0}', space=vmem, size = 0x40000, scoped, tag = 'input window, operand 5, single buffered']
    #allocation9 [shape = 's32[1]{0}', space=sflag, size = 0x4, scoped, tag = 'scoped memory for whist_net_forward.1']
    #allocation10 [shape = 'u8[131072]{0}', space=vmem, size = 0x20000, scoped, tag = 'input window, operand 7, single buffered']
    #allocation11 [shape = 'u8[4096]{0}', space=vmem, size = 0x1000, scoped, tag = 'output window, operand 0, single buffered']
    %14 = vsyncpa [#allocation3], 0
    %15 = vsyncpa [#allocation6], 0
    %16 = vsyncpa [#allocation9], 0
    %17 = vsyncpa [#allocation4], 0
    // Predicated region
    $region2: #{whist_net_forward.1} parent=1 // pred_check
      _
    $region3: #{whist_net_forward.1} parent=1 // pred_check_branch
      %19 = sbr.rel (0) target = $region5
    $region4: #{whist_net_forward.1} parent=1 // pred_region
      %s21 = ssub.s32 128, 128
      %22 = vsyncadd [#allocation3], %s21
      %s24 = sshll.u32 [#allocation2], 4
      %s25 = int_to_ptr.vmem [resolvable:$true] %s24
      %27 = dma.hbm_to_vmem [thread:$0]  %s0, 128, %s25, [#allocation3]
    $region5: #{whist_net_forward.1} parent=1 // pred_fallthru
      _
    // Predicated region
    $region6: #{whist_net_forward.1} parent=1 // pred_check
      _
    $region7: #{whist_net_forward.1} parent=1 // pred_check_branch
      %29 = sbr.rel (0) target = $region9
    $region8: #{whist_net_forward.1} parent=1 // pred_region
      %s31 = ssub.s32 2048, 2048
      %32 = vsyncadd [#allocation6], %s31
      %s33 = sshll.u32 [#allocation5], 4
      %s34 = int_to_ptr.vmem [resolvable:$true] %s33
      %39 = dma.hbm_to_vmem [thread:$0]  %s1, 2048, %s34, [#allocation6], 256, 256, 16
    $region9: #{whist_net_forward.1} parent=1 // pred_fallthru
      _
    // Predicated region
    $region10: #{whist_net_forward.1} parent=1 // pred_check
      _
    $region11: #{whist_net_forward.1} parent=1 // pred_check_branch
      %41 = sbr.rel (0) target = $region13
    $region12: #{whist_net_forward.1} parent=1 // pred_region
      _
    $region13: #{whist_net_forward.1} parent=1 // pred_fallthru
      _
    // Predicated region
    $region14: #{whist_net_forward.1} parent=1 // pred_check
      _
    $region15: #{whist_net_forward.1} parent=1 // pred_check_branch
      %43 = sbr.rel (0) target = $region17
    $region16: #{whist_net_forward.1} parent=1 // pred_region
      %s45 = ssub.s32 8192, 8192
      %46 = vsyncadd [#allocation6], %s45
      %s47 = sshll.u32 [#allocation7], 4
      %s48 = int_to_ptr.vmem [resolvable:$true] %s47
      %53 = dma.hbm_to_vmem [thread:$0]  %s3, 8192, %s48, [#allocation6], 256, 256, 16
    $region17: #{whist_net_forward.1} parent=1 // pred_fallthru
      _
    // Predicated region
    $region18: #{whist_net_forward.1} parent=1 // pred_check
      _
    $region19: #{whist_net_forward.1} parent=1 // pred_check_branch
      %55 = sbr.rel (0) target = $region21
    $region20: #{whist_net_forward.1} parent=1 // pred_region
      _
    $region21: #{whist_net_forward.1} parent=1 // pred_fallthru
      _
    // Predicated region
    $region22: #{whist_net_forward.1} parent=1 // pred_check
      _
    $region23: #{whist_net_forward.1} parent=1 // pred_check_branch
      %57 = sbr.rel (0) target = $region25
    $region24: #{whist_net_forward.1} parent=1 // pred_region
      %s59 = ssub.s32 8192, 8192
      %60 = vsyncadd [#allocation9], %s59
      %s61 = sshll.u32 [#allocation8], 4
      %s62 = int_to_ptr.vmem [resolvable:$true] %s61
      %67 = dma.hbm_to_vmem [thread:$0]  %s5, 8192, %s62, [#allocation9], 256, 256, 16
    $region25: #{whist_net_forward.1} parent=1 // pred_fallthru
      _
    // Predicated region
    $region26: #{whist_net_forward.1} parent=1 // pred_check
      _
    $region27: #{whist_net_forward.1} parent=1 // pred_check_branch
      %69 = sbr.rel (0) target = $region29
    $region28: #{whist_net_forward.1} parent=1 // pred_region
      _
    $region29: #{whist_net_forward.1} parent=1 // pred_fallthru
      _
    // Predicated region
    $region30: #{whist_net_forward.1} parent=1 // pred_check
      _
    $region31: #{whist_net_forward.1} parent=1 // pred_check_branch
      %71 = sbr.rel (0) target = $region33
    $region32: #{whist_net_forward.1} parent=1 // pred_region
      %s73 = ssub.s32 4096, 4096
      %74 = vsyncadd [#allocation9], %s73
      %s75 = sshll.u32 [#allocation10], 4
      %s76 = int_to_ptr.vmem [resolvable:$true] %s75
      %81 = dma.hbm_to_vmem [thread:$0]  %s7, 4096, %s76, [#allocation9], 128, 128, 8
    $region33: #{whist_net_forward.1} parent=1 // pred_fallthru
      _
    // Predicated region
    $region34: #{whist_net_forward.1} parent=1 // pred_check
      _
    $region35: #{whist_net_forward.1} parent=1 // pred_check_branch
      %83 = sbr.rel (0) target = $region37
    $region36: #{whist_net_forward.1} parent=1 // pred_region
      _
    $region37: #{whist_net_forward.1} parent=1 // pred_fallthru
      _
    // Predicated region
    $region38: #{whist_net_forward.1} parent=1 // pred_check
      _
    $region39: #{whist_net_forward.1} parent=1 // pred_check_branch
      %85 = sbr.rel (0) target = $region41
    $region40: #{whist_net_forward.1} parent=1 // pred_region
      %86 = dma.done [#allocation3], 128
    $region41: #{whist_net_forward.1} parent=1 // pred_fallthru
      _
    // Predicated region
    $region42: #{whist_net_forward.1} parent=1 // pred_check
      _
    $region43: #{whist_net_forward.1} parent=1 // pred_check_branch
      %88 = sbr.rel (0) target = $region45
    $region44: #{whist_net_forward.1} parent=1 // pred_region
      %89 = dma.done [#allocation6], 2048
    $region45: #{whist_net_forward.1} parent=1 // pred_fallthru
      _
    // Predicated region
    $region46: #{whist_net_forward.1} parent=1 // pred_check
      _
    $region47: #{whist_net_forward.1} parent=1 // pred_check_branch
      %91 = sbr.rel (0) target = $region49
    $region48: #{whist_net_forward.1} parent=1 // pred_region
      %92 = dma.done [#allocation6], 8192
    $region49: #{whist_net_forward.1} parent=1 // pred_fallthru
      _
    // Predicated region
    $region50: #{whist_net_forward.1} parent=1 // pred_check
      _
    $region51: #{whist_net_forward.1} parent=1 // pred_check_branch
      %94 = sbr.rel (0) target = $region53
    $region52: #{whist_net_forward.1} parent=1 // pred_region
      %95 = dma.done [#allocation9], 8192
    $region53: #{whist_net_forward.1} parent=1 // pred_fallthru
      _
    // Predicated region
    $region54: #{whist_net_forward.1} parent=1 // pred_check
      _
    $region55: #{whist_net_forward.1} parent=1 // pred_check_branch
      %97 = sbr.rel (0) target = $region57
    $region56: #{whist_net_forward.1} parent=1 // pred_region
      %98 = dma.done [#allocation9], 4096
    $region57: #{whist_net_forward.1} parent=1 // pred_fallthru
      _
    %v99 = vld [vmem:[#allocation2] sm:$0xff]
    %v100 = vld [vmem:[#allocation5] sm:$0xff]
    %v101 = vld [vmem:[#allocation5 + $0x8] sm:$0xff]
    %v102 = vld [vmem:[#allocation5 + $0x10] sm:$0xff]
    %v103 = vld [vmem:[#allocation5 + $0x18] sm:$0xff]
    %v104 = vld [vmem:[#allocation5 + $0x20] sm:$0xff]
    %v105 = vld [vmem:[#allocation5 + $0x28] sm:$0xff]
    %v106 = vld [vmem:[#allocation5 + $0x30] sm:$0xff]
    %v107 = vld [vmem:[#allocation5 + $0x38] sm:$0xff]
    %v108 = vld [vmem:[#allocation5 + $0x40] sm:$0xff]
    %v109 = vld [vmem:[#allocation5 + $0x48] sm:$0xff]
    %v110 = vld [vmem:[#allocation5 + $0x50] sm:$0xff]
    %v111 = vld [vmem:[#allocation5 + $0x58] sm:$0xff]
    %v112 = vld [vmem:[#allocation5 + $0x60] sm:$0xff]
    %v113 = vld [vmem:[#allocation5 + $0x68] sm:$0xff]
    %v114 = vld [vmem:[#allocation5 + $0x70] sm:$0xff]
    %v115 = vld [vmem:[#allocation5 + $0x78] sm:$0xff]
    %v116 = vld [vmem:[%s2] sm:$0x3]
    %v118 = vlaneseq
    %v119 = vshrl.u32 %v118, 7
    %v120 = vsub.s32 0, %v119
    %v121 = vrot.slane %v116, %v120
    %v122 = vlaneseq
    %v123 = vshrl.u32 %v122, 7
    %v124 = vsub.s32 1, %v123
    %v125 = vrot.slane %v116, %v124
    %vm128 = vcmask 523264
    %v130 = vsel %vm128, %v99, 0
    %132 = vmatprep.subr.mxu0 %v101
    %133 = vmatpush1.msra.mxu0 %v100
    %134 = vmatprep.subr.mxu0 %v103
    %135 = vmatpush1.msra.mxu0 %v102
    %136 = vmatprep.subr.mxu0 %v105
    %137 = vmatpush1.msra.mxu0 %v104
    %138 = vmatprep.subr.mxu0 %v107
    %139 = vmatpush1.msra.mxu0 %v106
    %140 = vmatprep.subr.mxu0 %v109
    %141 = vmatpush1.msra.mxu0 %v108
    %142 = vmatprep.subr.mxu0 %v111
    %143 = vmatpush1.msra.mxu0 %v110
    %144 = vmatprep.subr.mxu0 %v113
    %145 = vmatpush1.msra.mxu0 %v112
    %146 = vmatprep.subr.mxu0 %v115
    %147 = vmatpush1.msra.mxu0 %v114
    %148 = vmatprep.subr.mxu0 0.0
    %149 = vmatpush1.msra.mxu0 0.0
    %150 = vmatprep.subr.mxu0 0.0
    %151 = vmatpush1.msra.mxu0 0.0
    %152 = vmatprep.subr.mxu0 0.0
    %153 = vmatpush1.msra.mxu0 0.0
    %154 = vmatprep.subr.mxu0 0.0
    %155 = vmatpush1.msra.mxu0 0.0
    %156 = vmatprep.subr.mxu0 0.0
    %157 = vmatpush1.msra.mxu0 0.0
    %158 = vmatprep.subr.mxu0 0.0
    %159 = vmatpush1.msra.mxu0 0.0
    %160 = vmatprep.subr.mxu0 0.0
    %161 = vmatpush1.msra.mxu0 0.0
    %162 = vmatprep.subr.mxu0 0.0
    %163 = vmatpush1.msra.mxu0 0.0
    %164 = vmatprep.subr.mxu0 0.0
    %165 = vmatpush1.msra.mxu0 0.0
    %166 = vmatprep.subr.mxu0 0.0
    %167 = vmatpush1.msra.mxu0 0.0
    %168 = vmatprep.subr.mxu0 0.0
    %169 = vmatpush1.msra.mxu0 0.0
    %170 = vmatprep.subr.mxu0 0.0
    %171 = vmatpush1.msra.mxu0 0.0
    %172 = vmatprep.subr.mxu0 0.0
    %173 = vmatpush1.msra.mxu0 0.0
    %174 = vmatprep.subr.mxu0 0.0
    %175 = vmatpush1.msra.mxu0 0.0
    %176 = vmatprep.subr.mxu0 0.0
    %177 = vmatpush1.msra.mxu0 0.0
    %178 = vmatprep.subr.mxu0 0.0
    %179 = vmatpush1.msra.mxu0 0.0
    %180 = vmatprep.subr.mxu0 0.0
    %181 = vmatpush1.msra.mxu0 0.0
    %182 = vmatprep.subr.mxu0 0.0
    %183 = vmatpush1.msra.mxu0 0.0
    %184 = vmatprep.subr.mxu0 0.0
    %185 = vmatpush1.msra.mxu0 0.0
    %186 = vmatprep.subr.mxu0 0.0
    %187 = vmatpush1.msra.mxu0 0.0
    %188 = vmatprep.subr.mxu0 0.0
    %189 = vmatpush1.msra.mxu0 0.0
    %190 = vmatprep.subr.mxu0 0.0
    %191 = vmatpush1.msra.mxu0 0.0
    %192 = vmatprep.subr.mxu0 0.0
    %193 = vmatpush1.msra.mxu0 0.0
    %194 = vmatprep.subr.mxu0 0.0
    %195 = vmatpush1.msra.mxu0 0.0
    %196 = vmatprep.mubr.f32.mxu0 0.0
    %197 = vmatmul.mubr.f32.gmra.mrb[0].mxu0 %v130
    %v198 = vpop.f32.mrb[0].mxu0
    %v199 = vadd.f32 %v121, %v198
    %v200 = vpop.f32.mrb[0].mxu0
    %v201 = vadd.f32 %v125, %v200
    %202 = vdwg.mxu0
    %v203 = vmax.f32 %v199, 0.0
    %v204 = vmax.f32 %v201, 0.0
    %v205 = vld [vmem:[#allocation7] sm:$0xff]
    %v206 = vld [vmem:[#allocation7 + $0x8] sm:$0xff]
    %v207 = vld [vmem:[#allocation7 + $0x10] sm:$0xff]
    %v208 = vld [vmem:[#allocation7 + $0x18] sm:$0xff]
    %v209 = vld [vmem:[#allocation7 + $0x20] sm:$0xff]
    %v210 = vld [vmem:[#allocation7 + $0x28] sm:$0xff]
    %v211 = vld [vmem:[#allocation7 + $0x30] sm:$0xff]
    %v212 = vld [vmem:[#allocation7 + $0x38] sm:$0xff]
    %v213 = vld [vmem:[#allocation7 + $0x40] sm:$0xff]
    %v214 = vld [vmem:[#allocation7 + $0x48] sm:$0xff]
    %v215 = vld [vmem:[#allocation7 + $0x50] sm:$0xff]
    %v216 = vld [vmem:[#allocation7 + $0x58] sm:$0xff]
    %v217 = vld [vmem:[#allocation7 + $0x60] sm:$0xff]
    %v218 = vld [vmem:[#allocation7 + $0x68] sm:$0xff]
    %v219 = vld [vmem:[#allocation7 + $0x70] sm:$0xff]
    %v220 = vld [vmem:[#allocation7 + $0x78] sm:$0xff]
    %v221 = vld [vmem:[#allocation7 + $0x80] sm:$0xff]
    %v222 = vld [vmem:[#allocation7 + $0x88] sm:$0xff]
    %v223 = vld [vmem:[#allocation7 + $0x90] sm:$0xff]
    %v224 = vld [vmem:[#allocation7 + $0x98] sm:$0xff]
    %v225 = vld [vmem:[#allocation7 + $0xa0] sm:$0xff]
    %v226 = vld [vmem:[#allocation7 + $0xa8] sm:$0xff]
    %v227 = vld [vmem:[#allocation7 + $0xb0] sm:$0xff]
    %v228 = vld [vmem:[#allocation7 + $0xb8] sm:$0xff]
    %v229 = vld [vmem:[#allocation7 + $0xc0] sm:$0xff]
    %v230 = vld [vmem:[#allocation7 + $0xc8] sm:$0xff]
    %v231 = vld [vmem:[#allocation7 + $0xd0] sm:$0xff]
    %v232 = vld [vmem:[#allocation7 + $0xd8] sm:$0xff]
    %v233 = vld [vmem:[#allocation7 + $0xe0] sm:$0xff]
    %v234 = vld [vmem:[#allocation7 + $0xe8] sm:$0xff]
    %v235 = vld [vmem:[#allocation7 + $0xf0] sm:$0xff]
    %v236 = vld [vmem:[#allocation7 + $0xf8] sm:$0xff]
    %v237 = vld [vmem:[#allocation7 + $0x100] sm:$0xff]
    %v238 = vld [vmem:[#allocation7 + $0x108] sm:$0xff]
    %v239 = vld [vmem:[#allocation7 + $0x110] sm:$0xff]
    %v240 = vld [vmem:[#allocation7 + $0x118] sm:$0xff]
    %v241 = vld [vmem:[#allocation7 + $0x120] sm:$0xff]
    %v242 = vld [vmem:[#allocation7 + $0x128] sm:$0xff]
    %v243 = vld [vmem:[#allocation7 + $0x130] sm:$0xff]
    %v244 = vld [vmem:[#allocation7 + $0x138] sm:$0xff]
    %v245 = vld [vmem:[#allocation7 + $0x140] sm:$0xff]
    %v246 = vld [vmem:[#allocation7 + $0x148] sm:$0xff]
    %v247 = vld [vmem:[#allocation7 + $0x150] sm:$0xff]
    %v248 = vld [vmem:[#allocation7 + $0x158] sm:$0xff]
    %v249 = vld [vmem:[#allocation7 + $0x160] sm:$0xff]
    %v250 = vld [vmem:[#allocation7 + $0x168] sm:$0xff]
    %v251 = vld [vmem:[#allocation7 + $0x170] sm:$0xff]
    %v252 = vld [vmem:[#allocation7 + $0x178] sm:$0xff]
    %v253 = vld [vmem:[#allocation7 + $0x180] sm:$0xff]
    %v254 = vld [vmem:[#allocation7 + $0x188] sm:$0xff]
    %v255 = vld [vmem:[#allocation7 + $0x190] sm:$0xff]
    %v256 = vld [vmem:[#allocation7 + $0x198] sm:$0xff]
    %v257 = vld [vmem:[#allocation7 + $0x1a0] sm:$0xff]
    %v258 = vld [vmem:[#allocation7 + $0x1a8] sm:$0xff]
    %v259 = vld [vmem:[#allocation7 + $0x1b0] sm:$0xff]
    %v260 = vld [vmem:[#allocation7 + $0x1b8] sm:$0xff]
    %v261 = vld [vmem:[#allocation7 + $0x1c0] sm:$0xff]
    %v262 = vld [vmem:[#allocation7 + $0x1c8] sm:$0xff]
    %v263 = vld [vmem:[#allocation7 + $0x1d0] sm:$0xff]
    %v264 = vld [vmem:[#allocation7 + $0x1d8] sm:$0xff]
    %v265 = vld [vmem:[#allocation7 + $0x1e0] sm:$0xff]
    %v266 = vld [vmem:[#allocation7 + $0x1e8] sm:$0xff]
    %v267 = vld [vmem:[#allocation7 + $0x1f0] sm:$0xff]
    %v268 = vld [vmem:[#allocation7 + $0x1f8] sm:$0xff]
    %v269 = vld [vmem:[%s4] sm:$0x3]
    %v271 = vlaneseq
    %v272 = vshrl.u32 %v271, 7
    %v273 = vsub.s32 0, %v272
    %v274 = vrot.slane %v269, %v273
    %v275 = vlaneseq
    %v276 = vshrl.u32 %v275, 7
    %v277 = vsub.s32 1, %v276
    %v278 = vrot.slane %v269, %v277
    %281 = vmatprep.subr.mxu0 %v206
    %282 = vmatpush1.msra.mxu0 %v205
    %283 = vmatprep.subr.mxu0 %v208
    %284 = vmatpush1.msra.mxu0 %v207
    %285 = vmatprep.subr.mxu0 %v210
    %286 = vmatpush1.msra.mxu0 %v209
    %287 = vmatprep.subr.mxu0 %v212
    %288 = vmatpush1.msra.mxu0 %v211
    %289 = vmatprep.subr.mxu0 %v214
    %290 = vmatpush1.msra.mxu0 %v213
    %291 = vmatprep.subr.mxu0 %v216
    %292 = vmatpush1.msra.mxu0 %v215
    %293 = vmatprep.subr.mxu0 %v218
    %294 = vmatpush1.msra.mxu0 %v217
    %295 = vmatprep.subr.mxu0 %v220
    %296 = vmatpush1.msra.mxu0 %v219
    %297 = vmatprep.subr.mxu0 %v222
    %298 = vmatpush1.msra.mxu0 %v221
    %299 = vmatprep.subr.mxu0 %v224
    %300 = vmatpush1.msra.mxu0 %v223
    %301 = vmatprep.subr.mxu0 %v226
    %302 = vmatpush1.msra.mxu0 %v225
    %303 = vmatprep.subr.mxu0 %v228
    %304 = vmatpush1.msra.mxu0 %v227
    %305 = vmatprep.subr.mxu0 %v230
    %306 = vmatpush1.msra.mxu0 %v229
    %307 = vmatprep.subr.mxu0 %v232
    %308 = vmatpush1.msra.mxu0 %v231
    %309 = vmatprep.subr.mxu0 %v234
    %310 = vmatpush1.msra.mxu0 %v233
    %311 = vmatprep.subr.mxu0 %v236
    %312 = vmatpush1.msra.mxu0 %v235
    %313 = vmatprep.subr.mxu0 %v238
    %314 = vmatpush1.msra.mxu0 %v237
    %315 = vmatprep.subr.mxu0 %v240
    %316 = vmatpush1.msra.mxu0 %v239
    %317 = vmatprep.subr.mxu0 %v242
    %318 = vmatpush1.msra.mxu0 %v241
    %319 = vmatprep.subr.mxu0 %v244
    %320 = vmatpush1.msra.mxu0 %v243
    %321 = vmatprep.subr.mxu0 %v246
    %322 = vmatpush1.msra.mxu0 %v245
    %323 = vmatprep.subr.mxu0 %v248
    %324 = vmatpush1.msra.mxu0 %v247
    %325 = vmatprep.subr.mxu0 %v250
    %326 = vmatpush1.msra.mxu0 %v249
    %327 = vmatprep.subr.mxu0 %v252
    %328 = vmatpush1.msra.mxu0 %v251
    %329 = vmatprep.subr.mxu0 %v254
    %330 = vmatpush1.msra.mxu0 %v253
    %331 = vmatprep.subr.mxu0 %v256
    %332 = vmatpush1.msra.mxu0 %v255
    %333 = vmatprep.subr.mxu0 %v258
    %334 = vmatpush1.msra.mxu0 %v257
    %335 = vmatprep.subr.mxu0 %v260
    %336 = vmatpush1.msra.mxu0 %v259
    %337 = vmatprep.subr.mxu0 %v262
    %338 = vmatpush1.msra.mxu0 %v261
    %339 = vmatprep.subr.mxu0 %v264
    %340 = vmatpush1.msra.mxu0 %v263
    %341 = vmatprep.subr.mxu0 %v266
    %342 = vmatpush1.msra.mxu0 %v265
    %343 = vmatprep.subr.mxu0 %v268
    %344 = vmatpush1.msra.mxu0 %v267
    %345 = vmatprep.mubr.f32.mxu0 %v204
    %346 = vmatmul.mubr.f32.gmra.mrb[0].mxu0 %v203
    %v347 = vpop.f32.mrb[0].mxu0
    %v348 = vadd.f32 %v274, %v347
    %v349 = vpop.f32.mrb[0].mxu0
    %v350 = vadd.f32 %v278, %v349
    %351 = vdwg.mxu0
    %v352 = vmax.f32 %v348, 0.0
    %v353 = vmax.f32 %v350, 0.0
    %v354 = vld [vmem:[#allocation8] sm:$0xff]
    %v355 = vld [vmem:[#allocation8 + $0x8] sm:$0xff]
    %v356 = vld [vmem:[#allocation8 + $0x10] sm:$0xff]
    %v357 = vld [vmem:[#allocation8 + $0x18] sm:$0xff]
    %v358 = vld [vmem:[#allocation8 + $0x20] sm:$0xff]
    %v359 = vld [vmem:[#allocation8 + $0x28] sm:$0xff]
    %v360 = vld [vmem:[#allocation8 + $0x30] sm:$0xff]
    %v361 = vld [vmem:[#allocation8 + $0x38] sm:$0xff]
    %v362 = vld [vmem:[#allocation8 + $0x40] sm:$0xff]
    %v363 = vld [vmem:[#allocation8 + $0x48] sm:$0xff]
    %v364 = vld [vmem:[#allocation8 + $0x50] sm:$0xff]
    %v365 = vld [vmem:[#allocation8 + $0x58] sm:$0xff]
    %v366 = vld [vmem:[#allocation8 + $0x60] sm:$0xff]
    %v367 = vld [vmem:[#allocation8 + $0x68] sm:$0xff]
    %v368 = vld [vmem:[#allocation8 + $0x70] sm:$0xff]
    %v369 = vld [vmem:[#allocation8 + $0x78] sm:$0xff]
    %v370 = vld [vmem:[#allocation8 + $0x80] sm:$0xff]
    %v371 = vld [vmem:[#allocation8 + $0x88] sm:$0xff]
    %v372 = vld [vmem:[#allocation8 + $0x90] sm:$0xff]
    %v373 = vld [vmem:[#allocation8 + $0x98] sm:$0xff]
    %v374 = vld [vmem:[#allocation8 + $0xa0] sm:$0xff]
    %v375 = vld [vmem:[#allocation8 + $0xa8] sm:$0xff]
    %v376 = vld [vmem:[#allocation8 + $0xb0] sm:$0xff]
    %v377 = vld [vmem:[#allocation8 + $0xb8] sm:$0xff]
    %v378 = vld [vmem:[#allocation8 + $0xc0] sm:$0xff]
    %v379 = vld [vmem:[#allocation8 + $0xc8] sm:$0xff]
    %v380 = vld [vmem:[#allocation8 + $0xd0] sm:$0xff]
    %v381 = vld [vmem:[#allocation8 + $0xd8] sm:$0xff]
    %v382 = vld [vmem:[#allocation8 + $0xe0] sm:$0xff]
    %v383 = vld [vmem:[#allocation8 + $0xe8] sm:$0xff]
    %v384 = vld [vmem:[#allocation8 + $0xf0] sm:$0xff]
    %v385 = vld [vmem:[#allocation8 + $0xf8] sm:$0xff]
    %v386 = vld [vmem:[#allocation8 + $0x100] sm:$0xff]
    %v387 = vld [vmem:[#allocation8 + $0x108] sm:$0xff]
    %v388 = vld [vmem:[#allocation8 + $0x110] sm:$0xff]
    %v389 = vld [vmem:[#allocation8 + $0x118] sm:$0xff]
    %v390 = vld [vmem:[#allocation8 + $0x120] sm:$0xff]
    %v391 = vld [vmem:[#allocation8 + $0x128] sm:$0xff]
    %v392 = vld [vmem:[#allocation8 + $0x130] sm:$0xff]
    %v393 = vld [vmem:[#allocation8 + $0x138] sm:$0xff]
    %v394 = vld [vmem:[#allocation8 + $0x140] sm:$0xff]
    %v395 = vld [vmem:[#allocation8 + $0x148] sm:$0xff]
    %v396 = vld [vmem:[#allocation8 + $0x150] sm:$0xff]
    %v397 = vld [vmem:[#allocation8 + $0x158] sm:$0xff]
    %v398 = vld [vmem:[#allocation8 + $0x160] sm:$0xff]
    %v399 = vld [vmem:[#allocation8 + $0x168] sm:$0xff]
    %v400 = vld [vmem:[#allocation8 + $0x170] sm:$0xff]
    %v401 = vld [vmem:[#allocation8 + $0x178] sm:$0xff]
    %v402 = vld [vmem:[#allocation8 + $0x180] sm:$0xff]
    %v403 = vld [vmem:[#allocation8 + $0x188] sm:$0xff]
    %v404 = vld [vmem:[#allocation8 + $0x190] sm:$0xff]
    %v405 = vld [vmem:[#allocation8 + $0x198] sm:$0xff]
    %v406 = vld [vmem:[#allocation8 + $0x1a0] sm:$0xff]
    %v407 = vld [vmem:[#allocation8 + $0x1a8] sm:$0xff]
    %v408 = vld [vmem:[#allocation8 + $0x1b0] sm:$0xff]
    %v409 = vld [vmem:[#allocation8 + $0x1b8] sm:$0xff]
    %v410 = vld [vmem:[#allocation8 + $0x1c0] sm:$0xff]
    %v411 = vld [vmem:[#allocation8 + $0x1c8] sm:$0xff]
    %v412 = vld [vmem:[#allocation8 + $0x1d0] sm:$0xff]
    %v413 = vld [vmem:[#allocation8 + $0x1d8] sm:$0xff]
    %v414 = vld [vmem:[#allocation8 + $0x1e0] sm:$0xff]
    %v415 = vld [vmem:[#allocation8 + $0x1e8] sm:$0xff]
    %v416 = vld [vmem:[#allocation8 + $0x1f0] sm:$0xff]
    %v417 = vld [vmem:[#allocation8 + $0x1f8] sm:$0xff]
    %v418 = vld [vmem:[%s6] sm:$0x3]
    %v420 = vlaneseq
    %v421 = vshrl.u32 %v420, 7
    %v422 = vsub.s32 0, %v421
    %v423 = vrot.slane %v418, %v422
    %v424 = vlaneseq
    %v425 = vshrl.u32 %v424, 7
    %v426 = vsub.s32 1, %v425
    %v427 = vrot.slane %v418, %v426
    %430 = vmatprep.subr.mxu0 %v355
    %431 = vmatpush1.msra.mxu0 %v354
    %432 = vmatprep.subr.mxu0 %v357
    %433 = vmatpush1.msra.mxu0 %v356
    %434 = vmatprep.subr.mxu0 %v359
    %435 = vmatpush1.msra.mxu0 %v358
    %436 = vmatprep.subr.mxu0 %v361
    %437 = vmatpush1.msra.mxu0 %v360
    %438 = vmatprep.subr.mxu0 %v363
    %439 = vmatpush1.msra.mxu0 %v362
    %440 = vmatprep.subr.mxu0 %v365
    %441 = vmatpush1.msra.mxu0 %v364
    %442 = vmatprep.subr.mxu0 %v367
    %443 = vmatpush1.msra.mxu0 %v366
    %444 = vmatprep.subr.mxu0 %v369
    %445 = vmatpush1.msra.mxu0 %v368
    %446 = vmatprep.subr.mxu0 %v371
    %447 = vmatpush1.msra.mxu0 %v370
    %448 = vmatprep.subr.mxu0 %v373
    %449 = vmatpush1.msra.mxu0 %v372
    %450 = vmatprep.subr.mxu0 %v375
    %451 = vmatpush1.msra.mxu0 %v374
    %452 = vmatprep.subr.mxu0 %v377
    %453 = vmatpush1.msra.mxu0 %v376
    %454 = vmatprep.subr.mxu0 %v379
    %455 = vmatpush1.msra.mxu0 %v378
    %456 = vmatprep.subr.mxu0 %v381
    %457 = vmatpush1.msra.mxu0 %v380
    %458 = vmatprep.subr.mxu0 %v383
    %459 = vmatpush1.msra.mxu0 %v382
    %460 = vmatprep.subr.mxu0 %v385
    %461 = vmatpush1.msra.mxu0 %v384
    %462 = vmatprep.subr.mxu0 %v387
    %463 = vmatpush1.msra.mxu0 %v386
    %464 = vmatprep.subr.mxu0 %v389
    %465 = vmatpush1.msra.mxu0 %v388
    %466 = vmatprep.subr.mxu0 %v391
    %467 = vmatpush1.msra.mxu0 %v390
    %468 = vmatprep.subr.mxu0 %v393
    %469 = vmatpush1.msra.mxu0 %v392
    %470 = vmatprep.subr.mxu0 %v395
    %471 = vmatpush1.msra.mxu0 %v394
    %472 = vmatprep.subr.mxu0 %v397
    %473 = vmatpush1.msra.mxu0 %v396
    %474 = vmatprep.subr.mxu0 %v399
    %475 = vmatpush1.msra.mxu0 %v398
    %476 = vmatprep.subr.mxu0 %v401
    %477 = vmatpush1.msra.mxu0 %v400
    %478 = vmatprep.subr.mxu0 %v403
    %479 = vmatpush1.msra.mxu0 %v402
    %480 = vmatprep.subr.mxu0 %v405
    %481 = vmatpush1.msra.mxu0 %v404
    %482 = vmatprep.subr.mxu0 %v407
    %483 = vmatpush1.msra.mxu0 %v406
    %484 = vmatprep.subr.mxu0 %v409
    %485 = vmatpush1.msra.mxu0 %v408
    %486 = vmatprep.subr.mxu0 %v411
    %487 = vmatpush1.msra.mxu0 %v410
    %488 = vmatprep.subr.mxu0 %v413
    %489 = vmatpush1.msra.mxu0 %v412
    %490 = vmatprep.subr.mxu0 %v415
    %491 = vmatpush1.msra.mxu0 %v414
    %492 = vmatprep.subr.mxu0 %v417
    %493 = vmatpush1.msra.mxu0 %v416
    %494 = vmatprep.mubr.f32.mxu0 %v353
    %495 = vmatmul.mubr.f32.gmra.mrb[0].mxu0 %v352
    %v496 = vpop.f32.mrb[0].mxu0
    %v497 = vadd.f32 %v423, %v496
    %v498 = vpop.f32.mrb[0].mxu0
    %v499 = vadd.f32 %v427, %v498
    %500 = vdwg.mxu0
    %v501 = vmax.f32 %v497, 0.0
    %v502 = vmax.f32 %v499, 0.0
    %v503 = vld [vmem:[#allocation10] sm:$0xff]
    %v504 = vld [vmem:[#allocation10 + $0x8] sm:$0xff]
    %v505 = vld [vmem:[#allocation10 + $0x10] sm:$0xff]
    %v506 = vld [vmem:[#allocation10 + $0x18] sm:$0xff]
    %v507 = vld [vmem:[#allocation10 + $0x20] sm:$0xff]
    %v508 = vld [vmem:[#allocation10 + $0x28] sm:$0xff]
    %v509 = vld [vmem:[#allocation10 + $0x30] sm:$0xff]
    %v510 = vld [vmem:[#allocation10 + $0x38] sm:$0xff]
    %v511 = vld [vmem:[#allocation10 + $0x40] sm:$0xff]
    %v512 = vld [vmem:[#allocation10 + $0x48] sm:$0xff]
    %v513 = vld [vmem:[#allocation10 + $0x50] sm:$0xff]
    %v514 = vld [vmem:[#allocation10 + $0x58] sm:$0xff]
    %v515 = vld [vmem:[#allocation10 + $0x60] sm:$0xff]
    %v516 = vld [vmem:[#allocation10 + $0x68] sm:$0xff]
    %v517 = vld [vmem:[#allocation10 + $0x70] sm:$0xff]
    %v518 = vld [vmem:[#allocation10 + $0x78] sm:$0xff]
    %v519 = vld [vmem:[#allocation10 + $0x80] sm:$0xff]
    %v520 = vld [vmem:[#allocation10 + $0x88] sm:$0xff]
    %v521 = vld [vmem:[#allocation10 + $0x90] sm:$0xff]
    %v522 = vld [vmem:[#allocation10 + $0x98] sm:$0xff]
    %v523 = vld [vmem:[#allocation10 + $0xa0] sm:$0xff]
    %v524 = vld [vmem:[#allocation10 + $0xa8] sm:$0xff]
    %v525 = vld [vmem:[#allocation10 + $0xb0] sm:$0xff]
    %v526 = vld [vmem:[#allocation10 + $0xb8] sm:$0xff]
    %v527 = vld [vmem:[#allocation10 + $0xc0] sm:$0xff]
    %v528 = vld [vmem:[#allocation10 + $0xc8] sm:$0xff]
    %v529 = vld [vmem:[#allocation10 + $0xd0] sm:$0xff]
    %v530 = vld [vmem:[#allocation10 + $0xd8] sm:$0xff]
    %v531 = vld [vmem:[#allocation10 + $0xe0] sm:$0xff]
    %v532 = vld [vmem:[#allocation10 + $0xe8] sm:$0xff]
    %v533 = vld [vmem:[#allocation10 + $0xf0] sm:$0xff]
    %v534 = vld [vmem:[#allocation10 + $0xf8] sm:$0xff]
    %v535 = vld [vmem:[%s8] sm:$0x1]
    %v537 = vlaneseq
    %v538 = vshrl.u32 %v537, 7
    %v539 = vsub.s32 0, %v538
    %v540 = vrot.slane %v535, %v539
    %542 = vmatprep.subr.mxu0 0.0
    %543 = vmatpush1.msra.mxu0 %v503
    %544 = vmatprep.subr.mxu0 0.0
    %545 = vmatpush1.msra.mxu0 %v504
    %546 = vmatprep.subr.mxu0 0.0
    %547 = vmatpush1.msra.mxu0 %v505
    %548 = vmatprep.subr.mxu0 0.0
    %549 = vmatpush1.msra.mxu0 %v506
    %550 = vmatprep.subr.mxu0 0.0
    %551 = vmatpush1.msra.mxu0 %v507
    %552 = vmatprep.subr.mxu0 0.0
    %553 = vmatpush1.msra.mxu0 %v508
    %554 = vmatprep.subr.mxu0 0.0
    %555 = vmatpush1.msra.mxu0 %v509
    %556 = vmatprep.subr.mxu0 0.0
    %557 = vmatpush1.msra.mxu0 %v510
    %558 = vmatprep.subr.mxu0 0.0
    %559 = vmatpush1.msra.mxu0 %v511
    %560 = vmatprep.subr.mxu0 0.0
    %561 = vmatpush1.msra.mxu0 %v512
    %562 = vmatprep.subr.mxu0 0.0
    %563 = vmatpush1.msra.mxu0 %v513
    %564 = vmatprep.subr.mxu0 0.0
    %565 = vmatpush1.msra.mxu0 %v514
    %566 = vmatprep.subr.mxu0 0.0
    %567 = vmatpush1.msra.mxu0 %v515
    %568 = vmatprep.subr.mxu0 0.0
    %569 = vmatpush1.msra.mxu0 %v516
    %570 = vmatprep.subr.mxu0 0.0
    %571 = vmatpush1.msra.mxu0 %v517
    %572 = vmatprep.subr.mxu0 0.0
    %573 = vmatpush1.msra.mxu0 %v518
    %574 = vmatprep.subr.mxu0 0.0
    %575 = vmatpush1.msra.mxu0 %v519
    %576 = vmatprep.subr.mxu0 0.0
    %577 = vmatpush1.msra.mxu0 %v520
    %578 = vmatprep.subr.mxu0 0.0
    %579 = vmatpush1.msra.mxu0 %v521
    %580 = vmatprep.subr.mxu0 0.0
    %581 = vmatpush1.msra.mxu0 %v522
    %582 = vmatprep.subr.mxu0 0.0
    %583 = vmatpush1.msra.mxu0 %v523
    %584 = vmatprep.subr.mxu0 0.0
    %585 = vmatpush1.msra.mxu0 %v524
    %586 = vmatprep.subr.mxu0 0.0
    %587 = vmatpush1.msra.mxu0 %v525
    %588 = vmatprep.subr.mxu0 0.0
    %589 = vmatpush1.msra.mxu0 %v526
    %590 = vmatprep.subr.mxu0 0.0
    %591 = vmatpush1.msra.mxu0 %v527
    %592 = vmatprep.subr.mxu0 0.0
    %593 = vmatpush1.msra.mxu0 %v528
    %594 = vmatprep.subr.mxu0 0.0
    %595 = vmatpush1.msra.mxu0 %v529
    %596 = vmatprep.subr.mxu0 0.0
    %597 = vmatpush1.msra.mxu0 %v530
    %598 = vmatprep.subr.mxu0 0.0
    %599 = vmatpush1.msra.mxu0 %v531
    %600 = vmatprep.subr.mxu0 0.0
    %601 = vmatpush1.msra.mxu0 %v532
    %602 = vmatprep.subr.mxu0 0.0
    %603 = vmatpush1.msra.mxu0 %v533
    %604 = vmatprep.subr.mxu0 0.0
    %605 = vmatpush1.msra.mxu0 %v534
    %606 = vmatprep.mubr.f32.mxu0 %v502
    %607 = vmatmul.mubr.f32.gmra.mrb[0].mxu0 %v501
    %v608 = vpop.f32.mrb[0].mxu0
    %v609 = vadd.f32 %v540, %v608
    %v610 = vpop.f32.mrb[0].mxu0
    %611 = vdwg.mxu0
    %612 = vst [vmem:[#allocation11] sm:$0xff] %v609
    // Predicated region
    $region58: #{whist_net_forward.1} parent=1 // pred_check
      _
    $region59: #{whist_net_forward.1} parent=1 // pred_check_branch
      %614 = sbr.rel (0) target = $region61
    $region60: #{whist_net_forward.1} parent=1 // pred_region
      %s616 = ssub.s32 128, 128
      %617 = vsyncadd [#allocation4], %s616
      %s619 = sshll.u32 [#allocation11], 4
      %s620 = int_to_ptr.vmem [resolvable:$true] %s619
      %622 = dma.vmem_to_hbm [thread:$0]  %s620, 128, %s9, [#allocation4]
    $region61: #{whist_net_forward.1} parent=1 // pred_fallthru
      _
    // Predicated region
    $region62: #{whist_net_forward.1} parent=1 // pred_check
      _
    $region63: #{whist_net_forward.1} parent=1 // pred_check_branch
      %624 = sbr.rel (0) target = $region65
    $region64: #{whist_net_forward.1} parent=1 // pred_region
      %625 = dma.done [#allocation4], 128
    $region65: #{whist_net_forward.1} parent=1 // pred_fallthru
      _
    %626 = vsyncpa [#allocation3], 1
    %627 = vsyncpa [#allocation6], 1
    %628 = vsyncpa [#allocation9], 1
    %629 = vsyncpa [#allocation4], 1

</llo_original>
